<compile_context>
chip_gen: v5e
topology: v5e:2x2
jax: 0.10.0
libtpu: 0.0.40
codegen_flags: <defaults>
</compile_context>

<pallas_src>
import math
import functools

import jax
import jax.numpy as jnp
from jax import lax
from jax.experimental import pallas as pl
from jax.experimental.pallas import tpu as pltpu


def _mha_kernel(x_ref, wqkv_ref, wo_ref, bo_ref, o_ref, *scratch,
                scale, head_dim, q_tile, weights_resident):
    """One (batch, q-tile, head) grid step: project one head, attend over the
    full sequence for this q tile, and accumulate that head's slice of the
    output projection into a buffer resident across the head axis."""
    qi = pl.program_id(1)
    h = pl.program_id(2)

    E = o_ref.shape[-1]
    Dh = head_dim

    if scratch:
        # Non-f32 output: accumulate in an f32 VMEM scratch, cast at the end.
        acc_ref = scratch[0]
        read_acc = lambda: acc_ref[...]
        def write_acc(v): acc_ref[...] = v
    else:
        # f32 output: accumulate directly into the resident output block.
        read_acc = lambda: o_ref[0]
        def write_acc(v): o_ref[0] = v

    # First head for this (batch, q-tile): seed with the output-projection bias.
    @pl.when(h == 0)
    def _():
        write_acc(jnp.broadcast_to(bo_ref[...], (q_tile, E)))

    # Weight views for this head. Resident weights live once in VMEM and are
    # indexed by `h`; streamed weights arrive as a size-1 leading block.
    widx = h if weights_resident else 0
    wqkv = wqkv_ref[widx]                                    # (E, 3*Dh) bf16
    wo_h = wo_ref[widx]                                      # (Dh, E)   bf16

    x = x_ref[0]                                             # (S, E) bf16

    if q_tile == x.shape[0]:
        # Single q tile: one packed MXU matmul with N = 3*Dh.
        qkv = jnp.dot(x, wqkv, preferred_element_type=jnp.float32)        # (S, 3Dh)
        q = qkv[:, :Dh]
        k = qkv[:, Dh:2 * Dh]
        v = qkv[:, 2 * Dh:]
    else:
        # q-tiled: K/V projected from the full sequence, Q only from this tile.
        kv = jnp.dot(x, wqkv[:, Dh:], preferred_element_type=jnp.float32)  # (S, 2Dh)
        k = kv[:, :Dh]
        v = kv[:, Dh:]
        q_start = pl.multiple_of(qi * q_tile, q_tile)
        xq = x_ref[0, pl.ds(q_start, q_tile), :]                           # (tq, E)
        q = jnp.dot(xq, wqkv[:, :Dh], preferred_element_type=jnp.float32)  # (tq, Dh)

    # Fold the 1/sqrt(Dh) scale into the small (tq, Dh) q, not the (tq, S) scores.
    q_bf = (q * scale).astype(jnp.bfloat16)
    k_bf = k.astype(jnp.bfloat16)
    v_bf = v.astype(jnp.bfloat16)

    # q @ k^T without an explicit transpose (contract the last dims).
    s = lax.dot_general(q_bf, k_bf, (((1,), (1,)), ((), ())),
                        preferred_element_type=jnp.float32)                # (tq, S)

    # Numerically stable softmax with DEFERRED normalization: normalize the
    # small (tq, Dh) context after p @ v instead of the (tq, S) probabilities.
    # TODO(synk): on v6e/v7x a bf16 exp path can relieve the EUP when it is the
    #             saturating unit (do not do this on v5e).
    s = s - jnp.max(s, axis=-1, keepdims=True)
    p = jnp.exp(s)
    l = jnp.sum(p, axis=-1, keepdims=True)                                 # (tq, 1)

    ctx = jnp.dot(p.astype(jnp.bfloat16), v_bf,
                  preferred_element_type=jnp.float32)                      # (tq, Dh)
    ctx = ctx * pl.reciprocal(l, approx=True)                              # EUP slot

    # Accumulate this head's output-projection contribution: ctx_h @ Wo_h.
    write_acc(read_acc() + jnp.dot(ctx.astype(jnp.bfloat16), wo_h,
                                   preferred_element_type=jnp.float32))    # (tq, E)

    if scratch:
        # Last head: write the finished tile (cast to the output dtype).
        @pl.when(h == pl.num_programs(2) - 1)
        def _():
            o_ref[0] = read_acc().astype(o_ref.dtype)


def multi_head_attention(x, wq, wk, wv, wo, bo, *, num_heads, q_tile=None,
                         weight_vmem_budget=24 * 1024 * 1024):
    """x: (B, S, E); wq/wk/wv/wo: (E, E) torch-Linear weights (y = x @ W.T + b);
    bo: (E,). Returns (B, S, E) in x.dtype. mask=None path only."""
    B, S, E = x.shape
    H = num_heads
    Dh = E // H
    assert E % H == 0, "embed_size must be divisible by num_heads"

    # q tile: full S unless S is large. Tiling bounds the (tq, S) score
    # temporaries / output block in VMEM and adds a second parallel grid axis.
    if q_tile is None:
        q_tile = S if S <= 512 else 512
    if S % q_tile != 0:
        q_tile = S   # TODO(synk): handle ragged S with a masked final q tile.
    n_qt = S // q_tile

    # Head-major packed bf16 weights:
    #   wqkv_hm[h] = [Wq_h^T | Wk_h^T | Wv_h^T] : (E, 3*Dh)
    #   wo_hm[h]   = Wo_h^T                      : (Dh, E)
    def head_major_in(w):   # torch layout (E_out, E_in) -> (H, E_in, Dh)
        return jnp.transpose(w.T.reshape(E, H, Dh), (1, 0, 2))

    wqkv_hm = jnp.concatenate(
        [head_major_in(wq), head_major_in(wk), head_major_in(wv)],
        axis=-1).astype(jnp.bfloat16)                               # (H, E, 3*Dh)
    wo_hm = wo.T.reshape(H, Dh, E).astype(jnp.bfloat16)             # (H, Dh, E)
    bo_2d = bo.reshape(1, E).astype(jnp.float32)

    # Cast x once here: halves the x-block DMA and removes the per-head cast.
    x_bf = x.astype(jnp.bfloat16)

    # Keep all weights resident for the whole call when they fit the budget
    # (constant index_map -> single DMA); otherwise stream them per head.
    weight_bytes = (wqkv_hm.size + wo_hm.size) * 2
    weights_resident = weight_bytes <= weight_vmem_budget
    if weights_resident:
        wqkv_spec = pl.BlockSpec((H, E, 3 * Dh), lambda b, qi, h: (0, 0, 0))
        wo_spec = pl.BlockSpec((H, Dh, E), lambda b, qi, h: (0, 0, 0))
    else:
        wqkv_spec = pl.BlockSpec((1, E, 3 * Dh), lambda b, qi, h: (h, 0, 0))
        wo_spec = pl.BlockSpec((1, Dh, E), lambda b, qi, h: (h, 0, 0))

    out_dtype = x.dtype
    out_itemsize = jnp.dtype(out_dtype).itemsize
    acc_in_out = jnp.dtype(out_dtype) == jnp.dtype(jnp.float32)
    scratch_shapes = [] if acc_in_out else [pltpu.VMEM((q_tile, E), jnp.float32)]

    # Explicit VMEM limit sized to blocks + scratch + temporaries (with margin),
    # clamped to the chip's physical VMEM.
    wqkv_blk = (H if weights_resident else 1) * E * 3 * Dh * 2
    wo_blk = (H if weights_resident else 1) * Dh * E * 2
    vmem_est = (
        2 * S * E * 2                                   # x block (bf16, dbl-buffered)
        + 2 * (wqkv_blk + wo_blk)                       # weight blocks
        + 2 * E * 4 * 2                                 # bias block
        + 2 * q_tile * E * out_itemsize                 # output block (dbl-buffered)
        + (0 if acc_in_out else q_tile * E * 4)         # accumulator scratch
        + 4 * q_tile * S * 4                            # score/exp temporaries
        + 2 * S * 3 * Dh * 4                            # projection temporaries
    )
    try:
        vmem_cap = int(pltpu.get_tpu_info().vmem_capacity_bytes)
    except Exception:
        vmem_cap = 64 * 1024 * 1024                     # conservative (v7x per-TC)
    vmem_limit = min(vmem_cap,
                     max(32 * 1024 * 1024, int(vmem_est * 1.5) + (1 << 20)))

    kernel = functools.partial(
        _mha_kernel,
        scale=1.0 / math.sqrt(Dh),
        head_dim=Dh,
        q_tile=q_tile,
        weights_resident=weights_resident)

    grid_spec = pltpu.PrefetchScalarGridSpec(
        num_scalar_prefetch=0,
        grid=(B, n_qt, H),                                   # head = innermost reduction
        in_specs=[
            pl.BlockSpec((1, S, E), lambda b, qi, h: (b, 0, 0)),   # x (full S for K/V)
            wqkv_spec,                                             # packed Wq|Wk|Wv
            wo_spec,                                               # Wo^T per head
            pl.BlockSpec((1, E), lambda b, qi, h: (0, 0)),         # output bias
        ],
        out_specs=pl.BlockSpec((1, q_tile, E), lambda b, qi, h: (b, qi, 0)),
        scratch_shapes=scratch_shapes,
    )

    # Advisory cost estimate for XLA's scheduler.
    flops = B * (8 * S * E * E + 4 * S * S * E)
    transcendentals = B * H * S * S
    bytes_accessed = (
        2 * B * S * E                                       # x read (bf16)
        + out_itemsize * B * S * E                          # out write
        + 8 * E * E * (1 if weights_resident else B * n_qt) # weights
        + 4 * E)                                            # bias

    return pl.pallas_call(
        kernel,
        out_shape=jax.ShapeDtypeStruct((B, S, E), out_dtype),
        grid_spec=grid_spec,
        compiler_params=pltpu.CompilerParams(
            dimension_semantics=("parallel", "parallel", "arbitrary"),
            vmem_limit_bytes=vmem_limit),
        cost_estimate=pl.CostEstimate(
            flops=flops,
            transcendentals=transcendentals,
            bytes_accessed=bytes_accessed),
    )(x_bf, wqkv_hm, wo_hm, bo_2d)


def _reference(x, wq, wk, wv, wo, bo, *, num_heads):
    """Pure-JAX f32 reference mirroring the PyTorch forward (mask=None)."""
    B, S, E = x.shape
    Dh = E // num_heads
    q = (x @ wq.T).reshape(B, S, num_heads, Dh).transpose(0, 2, 1, 3)
    k = (x @ wk.T).reshape(B, S, num_heads, Dh).transpose(0, 2, 1, 3)
    v = (x @ wv.T).reshape(B, S, num_heads, Dh).transpose(0, 2, 1, 3)
    attn = jnp.einsum('bhqd,bhkd->bhqk', q, k) / math.sqrt(Dh)
    attn = jax.nn.softmax(attn, axis=-1)
    out = jnp.einsum('bhqk,bhkd->bhqd', attn, v)
    out = out.transpose(0, 2, 1, 3).reshape(B, S, E)
    return out @ wo.T + bo


if __name__ == "__main__":
    # Small shapes consistent with the module's forward.
    B, S, E, H = 2, 8, 32, 4

    key = jax.random.PRNGKey(0)
    kx, kq, kk, kv, ko, kb = jax.random.split(key, 6)

    # Deterministic parameter init (torch.nn.Linear-style uniform +/-1/sqrt(in)).
    bound = 1.0 / math.sqrt(E)
    x = jax.random.normal(kx, (B, S, E), dtype=jnp.float32)
    wq = jax.random.uniform(kq, (E, E), jnp.float32, -bound, bound)
    wk = jax.random.uniform(kk, (E, E), jnp.float32, -bound, bound)
    wv = jax.random.uniform(kv, (E, E), jnp.float32, -bound, bound)
    wo = jax.random.uniform(ko, (E, E), jnp.float32, -bound, bound)
    bo = jax.random.uniform(kb, (E,), jnp.float32, -bound, bound)

    out = multi_head_attention(x, wq, wk, wv, wo, bo, num_heads=H)
    out = jax.block_until_ready(out)

    ref = _reference(x, wq, wk, wv, wo, bo, num_heads=H)
    assert out.shape == (B, S, E)
    # bf16 MXU operands + approx reciprocal -> looser tolerance vs f32 reference
    # (intentional precision trade-off).
    assert jnp.allclose(out, ref, atol=5e-2, rtol=5e-2), "mismatch vs reference"

    print("KERNEL_OK")
</pallas_src>

<mosaic_0001>
module attributes {stable_mosaic.version = 11 : i64} {
  func.func @_mha_kernel(%arg0: i32, %arg1: i32, %arg2: i32, %arg3: memref<1x8x32xbf16, #tpu.memory_space<vmem>>, %arg4: memref<4x32x24xbf16, #tpu.memory_space<vmem>>, %arg5: memref<4x8x32xbf16, #tpu.memory_space<vmem>>, %arg6: memref<1x32xf32, #tpu.memory_space<vmem>>, %arg7: memref<1x8x32xf32, #tpu.memory_space<vmem>>) attributes {dimension_semantics = [#tpu.dimension_semantics<parallel>, #tpu.dimension_semantics<parallel>, #tpu.dimension_semantics<arbitrary>], iteration_bounds = array<i64: 2, 1, 4>, scalar_prefetch = 0 : i64, scratch_operands = 0 : i64, tpu.core_type = #tpu.core_type<tc>, window_params = [{transform_indices = @transform_0, window_bounds = array<i64: 1, 8, 32>}, {pipeline_mode = #tpu.pipeline_mode<synchronous>, transform_indices = @transform_1, window_bounds = array<i64: 4, 32, 24>}, {pipeline_mode = #tpu.pipeline_mode<synchronous>, transform_indices = @transform_2, window_bounds = array<i64: 4, 8, 32>}, {pipeline_mode = #tpu.pipeline_mode<synchronous>, transform_indices = @transform_3, window_bounds = array<i64: 1, 32>}, {transform_indices = @transform_4, window_bounds = array<i64: 1, 8, 32>}]} {
    %c0_i32 = arith.constant 0 : i32
    %0 = arith.cmpi eq, %arg2, %c0_i32 : i32
    %1 = arith.extui %0 : i1 to i32
    %c0_i32_0 = arith.constant 0 : i32
    %2 = arith.cmpi ne, %1, %c0_i32_0 : i32
    scf.if %2 {
      %c0_19 = arith.constant 0 : index
      %c0_20 = arith.constant 0 : index
      %41 = vector.load %arg6[%c0_19, %c0_20] : memref<1x32xf32, #tpu.memory_space<vmem>>, vector<1x32xf32>
      %42 = vector.shape_cast %41 : vector<1x32xf32> to vector<1x32xf32>
      %43 = vector.broadcast %42 : vector<1x32xf32> to vector<8x32xf32>
      %c0_21 = arith.constant 0 : index
      %c0_22 = arith.constant 0 : index
      %c0_23 = arith.constant 0 : index
      %44 = vector.load %arg7[%c0_21, %c0_22, %c0_23] : memref<1x8x32xf32, #tpu.memory_space<vmem>>, vector<1x8x32xf32>
      %45 = vector.shape_cast %44 : vector<1x8x32xf32> to vector<8x32xf32>
      %46 = vector.shape_cast %43 : vector<8x32xf32> to vector<1x8x32xf32>
      tpu.vector_store %arg7[%c0_21, %c0_22, %c0_23], %46 {strides = array<i32>} : memref<1x8x32xf32, #tpu.memory_space<vmem>>, vector<1x8x32xf32>,
    } else {
    }
    %3 = arith.index_cast %arg2 : i32 to index
    %c0 = arith.constant 0 : index
    %c0_1 = arith.constant 0 : index
    %4 = vector.load %arg4[%3, %c0, %c0_1] : memref<4x32x24xbf16, #tpu.memory_space<vmem>>, vector<1x32x24xbf16>
    %5 = vector.shape_cast %4 : vector<1x32x24xbf16> to vector<32x24xbf16>
    %6 = arith.index_cast %arg2 : i32 to index
    %c0_2 = arith.constant 0 : index
    %c0_3 = arith.constant 0 : index
    %7 = vector.load %arg5[%6, %c0_2, %c0_3] : memref<4x8x32xbf16, #tpu.memory_space<vmem>>, vector<1x8x32xbf16>
    %8 = vector.shape_cast %7 : vector<1x8x32xbf16> to vector<8x32xbf16>
    %c0_4 = arith.constant 0 : index
    %c0_5 = arith.constant 0 : index
    %c0_6 = arith.constant 0 : index
    %9 = vector.load %arg3[%c0_4, %c0_5, %c0_6] : memref<1x8x32xbf16, #tpu.memory_space<vmem>>, vector<1x8x32xbf16>
    %10 = vector.shape_cast %9 : vector<1x8x32xbf16> to vector<8x32xbf16>
    %cst = arith.constant dense<0.000000e+00> : vector<8x24xf32>
    %11 = tpu.matmul %10, %5, %cst {dimension_numbers = #tpu.dot_dimension_numbers<[1], [0], [0], [1], [0, 0, 1, 1], [], []>} : vector<8x32xbf16>, vector<32x24xbf16>, vector<8x24xf32> -> vector<8x24xf32>
    %12 = vector.extract_strided_slice %11 {offsets = [0, 0], sizes = [8, 8], strides = [1, 1]} : vector<8x24xf32> to vector<8x8xf32>
    %13 = vector.extract_strided_slice %11 {offsets = [0, 8], sizes = [8, 8], strides = [1, 1]} : vector<8x24xf32> to vector<8x8xf32>
    %14 = vector.extract_strided_slice %11 {offsets = [0, 16], sizes = [8, 8], strides = [1, 1]} : vector<8x24xf32> to vector<8x8xf32>
    %cst_7 = arith.constant 0.353553385 : f32
    %15 = vector.broadcast %cst_7 : f32 to vector<8x8xf32>
    %16 = arith.mulf %12, %15 : vector<8x8xf32>
    %17 = arith.truncf %16 : vector<8x8xf32> to vector<8x8xbf16>
    %18 = arith.truncf %13 : vector<8x8xf32> to vector<8x8xbf16>
    %19 = arith.truncf %14 : vector<8x8xf32> to vector<8x8xbf16>
    %cst_8 = arith.constant dense<0.000000e+00> : vector<8x8xf32>
    %20 = tpu.matmul %17, %18, %cst_8 {dimension_numbers = #tpu.dot_dimension_numbers<[1], [1], [0], [0], [0, 0, 1, 0], [], []>} : vector<8x8xbf16>, vector<8x8xbf16>, vector<8x8xf32> -> vector<8x8xf32>
    %cst_9 = arith.constant dense<0xFF800000> : vector<8xf32>
    %21 = vector.multi_reduction <maximumf>, %20, %cst_9 [1] : vector<8x8xf32> to vector<8xf32>
    %22 = vector.shape_cast %21 : vector<8xf32> to vector<8x1xf32>
    %23 = vector.broadcast %22 : vector<8x1xf32> to vector<8x8xf32>
    %24 = arith.subf %20, %23 : vector<8x8xf32>
    %25 = math.exp %24 : vector<8x8xf32>
    %cst_10 = arith.constant dense<0.000000e+00> : vector<8xf32>
    %26 = vector.multi_reduction <add>, %25, %cst_10 [1] : vector<8x8xf32> to vector<8xf32>
    %27 = vector.shape_cast %26 : vector<8xf32> to vector<8x1xf32>
    %28 = arith.truncf %25 : vector<8x8xf32> to vector<8x8xbf16>
    %cst_11 = arith.constant dense<0.000000e+00> : vector<8x8xf32>
    %29 = tpu.matmul %28, %19, %cst_11 {dimension_numbers = #tpu.dot_dimension_numbers<[1], [0], [0], [1], [0, 0, 1, 1], [], []>} : vector<8x8xbf16>, vector<8x8xbf16>, vector<8x8xf32> -> vector<8x8xf32>
    %30 = tpu.reciprocal %27 {approx = true} : vector<8x1xf32> -> vector<8x1xf32>
    %31 = vector.broadcast %30 : vector<8x1xf32> to vector<8x8xf32>
    %32 = arith.mulf %29, %31 : vector<8x8xf32>
    %c0_12 = arith.constant 0 : index
    %c0_13 = arith.constant 0 : index
    %c0_14 = arith.constant 0 : index
    %33 = vector.load %arg7[%c0_12, %c0_13, %c0_14] : memref<1x8x32xf32, #tpu.memory_space<vmem>>, vector<1x8x32xf32>
    %34 = vector.shape_cast %33 : vector<1x8x32xf32> to vector<8x32xf32>
    %35 = arith.truncf %32 : vector<8x8xf32> to vector<8x8xbf16>
    %cst_15 = arith.constant dense<0.000000e+00> : vector<8x32xf32>
    %36 = tpu.matmul %35, %8, %cst_15 {dimension_numbers = #tpu.dot_dimension_numbers<[1], [0], [0], [1], [0, 0, 1, 1], [], []>} : vector<8x8xbf16>, vector<8x32xbf16>, vector<8x32xf32> -> vector<8x32xf32>
    %37 = arith.addf %34, %36 : vector<8x32xf32>
    %c0_16 = arith.constant 0 : index
    %c0_17 = arith.constant 0 : index
    %c0_18 = arith.constant 0 : index
    %38 = vector.load %arg7[%c0_16, %c0_17, %c0_18] : memref<1x8x32xf32, #tpu.memory_space<vmem>>, vector<1x8x32xf32>
    %39 = vector.shape_cast %38 : vector<1x8x32xf32> to vector<8x32xf32>
    %40 = vector.shape_cast %37 : vector<8x32xf32> to vector<1x8x32xf32>
    tpu.vector_store %arg7[%c0_16, %c0_17, %c0_18], %40 {strides = array<i32>} : memref<1x8x32xf32, #tpu.memory_space<vmem>>, vector<1x8x32xf32>,
    return
  }
  func.func @transform_0(%arg0: i32, %arg1: i32, %arg2: i32) -> (i32, i32, i32) {
    %c0_i32 = arith.constant 0 : i32
    %c0_i32_0 = arith.constant 0 : i32
    %c0_i32_1 = arith.constant 0 : i32
    return %arg0, %c0_i32, %c0_i32_0 : i32, i32, i32
  }
  func.func @transform_1(%arg0: i32, %arg1: i32, %arg2: i32) -> (i32, i32, i32) {
    %c0_i32 = arith.constant 0 : i32
    %c0_i32_0 = arith.constant 0 : i32
    %c0_i32_1 = arith.constant 0 : i32
    %c0_i32_2 = arith.constant 0 : i32
    return %c0_i32, %c0_i32_0, %c0_i32_1 : i32, i32, i32
  }
  func.func @transform_2(%arg0: i32, %arg1: i32, %arg2: i32) -> (i32, i32, i32) {
    %c0_i32 = arith.constant 0 : i32
    %c0_i32_0 = arith.constant 0 : i32
    %c0_i32_1 = arith.constant 0 : i32
    %c0_i32_2 = arith.constant 0 : i32
    return %c0_i32, %c0_i32_0, %c0_i32_1 : i32, i32, i32
  }
  func.func @transform_3(%arg0: i32, %arg1: i32, %arg2: i32) -> (i32, i32) {
    %c0_i32 = arith.constant 0 : i32
    %c0_i32_0 = arith.constant 0 : i32
    %c0_i32_1 = arith.constant 0 : i32
    return %c0_i32, %c0_i32_0 : i32, i32
  }
  func.func @transform_4(%arg0: i32, %arg1: i32, %arg2: i32) -> (i32, i32, i32) {
    %c0_i32 = arith.constant 0 : i32
    %c0_i32_0 = arith.constant 0 : i32
    return %arg0, %arg1, %c0_i32 : i32, i32, i32
  }
}

</mosaic_0001>

<llo_original>
// kernel: tpu_custom_call.1
$region0: #{tpu_custom_call.1}
  #allocation0 [shape = 'u32[]', space=smem, size = 0x4, offset = 0x4, fixed_abs, tag = 'smem constant byte address 0x4 - core index']
  #allocation1 [shape = 'u32[72,128]{1,0:T(1,128)}', space=vmem, size = 0x9000, scoped, tag = 'internal scratch']
  %s0 = inlined_call_operand.vmem [shape: bf16[2,8,32], index: 0, kind: input, shape index: {}]
  %s1 = inlined_call_operand.vmem [shape: bf16[4,32,24], index: 1, kind: input, shape index: {}]
  %s2 = inlined_call_operand.vmem [shape: bf16[4,8,32], index: 2, kind: input, shape index: {}]
  %s3 = inlined_call_operand.vmem [shape: f32[1,32], index: 3, kind: input, shape index: {}]
  %s4 = inlined_call_operand.hbm [shape: f32[2,8,32], index: 4, kind: output, shape index: {}]
  %s5 = sld [smem:[#allocation0]]
  $region53: #{tpu_custom_call.1} parent=0
    _
  %s7 = ssub.s32 1, %s5
  %s8 = scalar_select 0, %s7, %s5
  $region1: #{tpu_custom_call.1} parent=0
    #allocation2 [shape = 'u8[8192]{0}', space=vmem, size = 0x2000, scoped, tag = 'output window, operand 0']
    #allocation3 [shape = 's32[2]{0}', space=sflag, size = 0x8, scoped, tag = 'scoped memory for tpu_custom_call.1']
    %9 = vsyncpa [#allocation3], 0
    %s10 = scalar_lea.sflag [#allocation3], 1
    %11 = vsyncpa %s10, 0
    loop: start=0, step=1, limit=10
    $region2: #{tpu_custom_call.1} parent=1 // loop_pre_header
      _
    $region3: #{tpu_custom_call.1} parent=1 // loop_header
      %s13 = sphi 0, %s17
      %p14 = scmp.ge.s32.totalorder %s13, 10
      %s20 = sphi 0, %s39
      %s21 = sphi 0, %s35
      %s22 = sphi 0, %s31
      %s23 = sphi 0, %s20
      %s24 = sphi 0, %s21
      %s25 = sphi 0, %s22
      %s26 = sphi 0, %s23
      %s27 = sphi 0, %s24
      %s28 = sphi 0, %s25
      %s42 = sphi 0, %s44
      %s45 = sphi 0, %s42
      %s46 = sphi 0, %s45
      %s62 = sphi 0, %s46
      %s66 = sphi 0, %s66
      %s68 = sphi 0, %s66
      %s69 = sphi 0, %s68
      %s83 = sphi 0, %s69
      %s87 = sphi 0, %s87
      %s89 = sphi 0, %s87
      %s90 = sphi 0, %s89
      %s104 = sphi 0, %s90
      %s108 = sphi 0, %s108
      %s110 = sphi 0, %s108
      %s111 = sphi 0, %s110
      %s125 = sphi 0, %s111
      %s133 = sphi 0, %s135
      %s136 = sphi 0, %s133
      %s137 = sphi 0, %s136
      %s153 = sphi 0, %s137
    $region4: #{tpu_custom_call.1} parent=1 // loop_header_branch
      %16 = sbr.rel (%p14) target = $region8
    $region5: #{tpu_custom_call.1} parent=1 // loop_body
      %s18 = ssub.s32 %s13, 1
      %s19 = ssub.s32 %s13, 2
      %s29 = sadd.s32 1, %s22
      %p30 = scmp.ge.s32.totalorder %s29, 4
      %s31 = scalar_select %p30, 0, %s29
      %s32 = sadd.s32 1, %s21
      %s33 = scalar_select %p30, %s32, %s21
      %p34 = scmp.ge.s32.totalorder %s33, 1
      %s35 = scalar_select %p34, 0, %s33
      %s36 = sadd.s32 1, %s20
      %s37 = scalar_select %p34, %s36, %s20
      %p38 = scmp.ge.s32.totalorder %s37, 2
      %s39 = scalar_select %p38, 0, %s37
      %s40 = ssub.s32 %s20, %s39
      %p41 = scmp.eq.s32.totalorder %s40, 0
      %s43 = sadd.s32 %s42, 1
      %s44 = scalar_select %p41, %s42, %s43
      %p47 = pneg %p41
      %p48 = scmp.eq.s32.totalorder %s13, 7
      %p49 = por %p47, %p48
      %p50 = scmp.ne.s32.totalorder %s42, %s45
      %p51 = scmp.eq.s32.totalorder %s13, 0
      %p52 = por %p50, %p51
      %p53 = scmp.ne.s32.totalorder %s42, %s45
      %p54 = scmp.eq.s32.totalorder %s18, 7
      %p55 = por %p53, %p54
      %p56 = scmp.ne.s32.totalorder %s45, %s46
      %p57 = scmp.eq.s32.totalorder %s18, 0
      %p58 = por %p56, %p57
      %p59 = scmp.ne.s32.totalorder %s45, %s46
      %p60 = scmp.eq.s32.totalorder %s19, 7
      %p61 = por %p59, %p60
      %p63 = scmp.ne.s32.totalorder %s46, %s62
      %p64 = scmp.eq.s32.totalorder %s19, 0
      %p65 = por %p63, %p64
      %s67 = sadd.s32 %s66, 1
      %p70 = scmp.eq.s32.totalorder %s13, 7
      %p71 = scmp.ne.s32.totalorder %s66, %s68
      %p72 = scmp.eq.s32.totalorder %s13, 0
      %p73 = por %p71, %p72
      %p74 = scmp.ne.s32.totalorder %s66, %s68
      %p75 = scmp.eq.s32.totalorder %s18, 7
      %p76 = por %p74, %p75
      %p77 = scmp.ne.s32.totalorder %s68, %s69
      %p78 = scmp.eq.s32.totalorder %s18, 0
      %p79 = por %p77, %p78
      %p80 = scmp.ne.s32.totalorder %s68, %s69
      %p81 = scmp.eq.s32.totalorder %s19, 7
      %p82 = por %p80, %p81
      %p84 = scmp.ne.s32.totalorder %s69, %s83
      %p85 = scmp.eq.s32.totalorder %s19, 0
      %p86 = por %p84, %p85
      %s88 = sadd.s32 %s87, 1
      %p91 = scmp.eq.s32.totalorder %s13, 7
      %p92 = scmp.ne.s32.totalorder %s87, %s89
      %p93 = scmp.eq.s32.totalorder %s13, 0
      %p94 = por %p92, %p93
      %p95 = scmp.ne.s32.totalorder %s87, %s89
      %p96 = scmp.eq.s32.totalorder %s18, 7
      %p97 = por %p95, %p96
      %p98 = scmp.ne.s32.totalorder %s89, %s90
      %p99 = scmp.eq.s32.totalorder %s18, 0
      %p100 = por %p98, %p99
      %p101 = scmp.ne.s32.totalorder %s89, %s90
      %p102 = scmp.eq.s32.totalorder %s19, 7
      %p103 = por %p101, %p102
      %p105 = scmp.ne.s32.totalorder %s90, %s104
      %p106 = scmp.eq.s32.totalorder %s19, 0
      %p107 = por %p105, %p106
      %s109 = sadd.s32 %s108, 1
      %p112 = scmp.eq.s32.totalorder %s13, 7
      %p113 = scmp.ne.s32.totalorder %s108, %s110
      %p114 = scmp.eq.s32.totalorder %s13, 0
      %p115 = por %p113, %p114
      %p116 = scmp.ne.s32.totalorder %s108, %s110
      %p117 = scmp.eq.s32.totalorder %s18, 7
      %p118 = por %p116, %p117
      %p119 = scmp.ne.s32.totalorder %s110, %s111
      %p120 = scmp.eq.s32.totalorder %s18, 0
      %p121 = por %p119, %p120
      %p122 = scmp.ne.s32.totalorder %s110, %s111
      %p123 = scmp.eq.s32.totalorder %s19, 7
      %p124 = por %p122, %p123
      %p126 = scmp.ne.s32.totalorder %s111, %s125
      %p127 = scmp.eq.s32.totalorder %s19, 0
      %p128 = por %p126, %p127
      %s129 = ssub.s32 %s20, %s39
      %s130 = ssub.s32 %s21, %s35
      %s131 = sor.u32 %s129, %s130
      %p132 = scmp.eq.s32.totalorder %s131, 0
      %s134 = sadd.s32 %s133, 1
      %s135 = scalar_select %p132, %s133, %s134
      %p138 = pneg %p132
      %p139 = scmp.eq.s32.totalorder %s13, 7
      %p140 = por %p138, %p139
      %p141 = scmp.ne.s32.totalorder %s133, %s136
      %p142 = scmp.eq.s32.totalorder %s13, 0
      %p143 = por %p141, %p142
      %p144 = scmp.ne.s32.totalorder %s133, %s136
      %p145 = scmp.eq.s32.totalorder %s18, 7
      %p146 = por %p144, %p145
      %p147 = scmp.ne.s32.totalorder %s136, %s137
      %p148 = scmp.eq.s32.totalorder %s18, 0
      %p149 = por %p147, %p148
      %p150 = scmp.ne.s32.totalorder %s136, %s137
      %p151 = scmp.eq.s32.totalorder %s19, 7
      %p152 = por %p150, %p151
      %p154 = scmp.ne.s32.totalorder %s137, %s153
      %p155 = scmp.eq.s32.totalorder %s19, 0
      %p156 = por %p154, %p155
      %p157 = scmp.le.s32.totalorder 1, %s13
      %p158 = scmp.lt.s32.totalorder %s13, 9
      %p159 = pnand %p157, %p158
      %p160 = pneg %p159
      // Predicated region
      $region9: #{tpu_custom_call.1} parent=5 // pred_check
        _
      $region10: #{tpu_custom_call.1} parent=5 // pred_check_branch
        %162 = sbr.rel (%p159) target = $region12
      $region11: #{tpu_custom_call.1} parent=5 // pred_region
        %s163 = ssub.s32 %s13, 1
        // Predicated region
        $region13: #{tpu_custom_call.1} parent=11 // pred_check
          %p164 = pneg %p79
        $region14: #{tpu_custom_call.1} parent=11 // pred_check_branch
          %166 = sbr.rel (%p164) target = $region16
        $region15: #{tpu_custom_call.1} parent=11 // pred_region
          _
        $region16: #{tpu_custom_call.1} parent=11 // pred_fallthru
          _
        // Predicated region
        $region17: #{tpu_custom_call.1} parent=11 // pred_check
          %p167 = pneg %p100
        $region18: #{tpu_custom_call.1} parent=11 // pred_check_branch
          %169 = sbr.rel (%p167) target = $region20
        $region19: #{tpu_custom_call.1} parent=11 // pred_region
          _
        $region20: #{tpu_custom_call.1} parent=11 // pred_fallthru
          _
        // Predicated region
        $region21: #{tpu_custom_call.1} parent=11 // pred_check
          %p170 = pneg %p121
        $region22: #{tpu_custom_call.1} parent=11 // pred_check_branch
          %172 = sbr.rel (%p170) target = $region24
        $region23: #{tpu_custom_call.1} parent=11 // pred_region
          _
        $region24: #{tpu_custom_call.1} parent=11 // pred_fallthru
          _
      $region12: #{tpu_custom_call.1} parent=5 // pred_fallthru
        _
      %p173 = scmp.lt.s32.totalorder %s13, 8
      // Predicated region
      $region25: #{tpu_custom_call.1} parent=5 // pred_check
        %p174 = pneg %p173
      $region26: #{tpu_custom_call.1} parent=5 // pred_check_branch
        %176 = sbr.rel (%p174) target = $region28
      $region27: #{tpu_custom_call.1} parent=5 // pred_region
        // Predicated region
        $region29: #{tpu_custom_call.1} parent=27 // pred_check
          %p177 = pneg %p52
        $region30: #{tpu_custom_call.1} parent=27 // pred_check_branch
          %179 = sbr.rel (%p177) target = $region32
        $region31: #{tpu_custom_call.1} parent=27 // pred_region
          %p180 = scmp.lt.s32.totalorder %s20, 1
          %s181 = scalar_select %p180, %s20, 1
          %s182 = smul.addr %s181, 4
          %s183 = scalar_lea.vmem %s0, %s182
        $region32: #{tpu_custom_call.1} parent=27 // pred_fallthru
          _
      $region28: #{tpu_custom_call.1} parent=5 // pred_fallthru
        _
      %p184 = scmp.le.s32.totalorder 1, %s13
      %p185 = scmp.lt.s32.totalorder %s13, 9
      %p186 = pnand %p184, %p185
      %p187 = pneg %p186
      // Predicated region
      $region33: #{tpu_custom_call.1} parent=5 // pred_check
        _
      $region34: #{tpu_custom_call.1} parent=5 // pred_check_branch
        %189 = sbr.rel (%p186) target = $region36
      $region35: #{tpu_custom_call.1} parent=5 // pred_region
        %s190 = ssub.s32 %s13, 1
        %p191 = scmp.lt.s32.totalorder %s23, 1
        %s192 = scalar_select %p191, %s23, 1
        %s193 = smul.addr %s192, 4
        %s194 = scalar_lea.vmem %s0, %s193
        %p195 = pneg %p58
        %p196 = pneg %p55
        %p197 = pneg %p79
        %p198 = pneg %p76
        %p199 = pneg %p100
        %p200 = pneg %p97
        %p201 = pneg %p121
        %p202 = pneg %p118
        %p203 = pneg %p149
        %p204 = pneg %p146
        %s205 = sand.u32 %s136, 1
        %s206 = scalar_lea.sflag [#allocation3], %s205
        %s207 = sand.u32 %s136, 1
        %s208 = smul.addr %s207, 8
        %s209 = scalar_lea.vmem [#allocation2], %s208
        %p210 = scmp.lt.s32.totalorder %s23, 1
        %s211 = scalar_select %p210, %s23, 1
        %s212 = smul.addr %s211, 4
        %s213 = scalar_lea.vmem %s0, %s212
        %p215 = scmp.eq.s32.totalorder %s25, 0
        // Predicated region
        $region37: #{tpu_custom_call.1} parent=35 // pred_check
          %p216 = pneg %p215
        $region38: #{tpu_custom_call.1} parent=35 // pred_check_branch
          %218 = sbr.rel (%p216) target = $region40
        $region39: #{tpu_custom_call.1} parent=35 // pred_region
          %v219 = vld [vmem:[%s3] sm:$0x1]
          %v221 = vperm.slane %v219, 0
          %vm223 = vcmask 261120
          %224 = vst.msk [vmem:[%s209] sm:$0xff] %vm223, %v221
        $region40: #{tpu_custom_call.1} parent=35 // pred_fallthru
          _
        %s225 = smul.u32 %s25, 4
        %s226 = smul.addr %s225, 4
        %s227 = scalar_lea.vmem %s1, %s226
        %v228 = vld [vmem:[%s227] sm:$0xf]
        %v229 = vld [vmem:[%s227 + $0x4] sm:$0xf]
        %v230 = vld [vmem:[%s227 + $0x8] sm:$0xf]
        %v231 = vld [vmem:[%s227 + $0xc] sm:$0xf]
        %s232 = smul.addr %s25, 4
        %s233 = scalar_lea.vmem %s2, %s232
        %v234 = vld [vmem:[%s233] sm:$0xf]
        %v235 = vld [vmem:[%s213] sm:$0xf]
        %v240 = vunpack.c.l.b16 %v228
        %v241 = vunpack.c.l.b16 %v229
        %v242 = vunpack.c.l.b16 %v230
        %v243 = vunpack.c.l.b16 %v231
        %v244 = vpack.c.b16 %v241, %v240
        %v245 = vpack.c.b16 %v243, %v242
        %vm248 = vcmask 261120
        %v250 = vsel %vm248, %v235, 0
        %252 = vmatpush.bf16.msra.mxu0 0
        %253 = vmatpush.bf16.msra.mxu0 0
        %254 = vmatpush.bf16.msra.mxu0 0
        %255 = vmatpush.bf16.msra.mxu0 0
        %256 = vmatpush.bf16.msra.mxu0 0
        %257 = vmatpush.bf16.msra.mxu0 0
        %258 = vmatpush.bf16.msra.mxu0 %v245
        %259 = vmatpush.bf16.msra.mxu0 %v244
        %260 = vmatmul.bf16.gmra.mxu0 %v250
        %v261 = vpop.f32.mrf.mxu0
        %v262 = vadd.f32 0.0, %v261
        %v263 = vpop.f32.mrf.mxu0
        %264 = vdwg.mxu0
        %v265 = vmul.f32 %v262, 0.35355338
        %v266 = vpack.c.bf16 %v265, %v265
        %v267 = vpack.c.bf16 %v262, %v262
        %269 = vrot.lane.b32.xlu0 %v267, 120
        %v270 = vpop.permute.xlu0 %269
        %vm271 = vcmask 64512
        %v273 = vsel %vm271, %v266, 0
        %v276 = vsel %vm271, %v270, 0
        %278 = vmatpush.bf16.xpose.msra.mxu0 0
        %279 = vmatpush.bf16.xpose.msra.mxu0 0
        %280 = vmatpush.bf16.xpose.msra.mxu0 0
        %281 = vmatpush.bf16.xpose.msra.mxu0 0
        %282 = vmatpush.bf16.xpose.msra.mxu0 0
        %283 = vmatpush.bf16.xpose.msra.mxu0 0
        %284 = vmatpush.bf16.xpose.msra.mxu0 0
        %285 = vmatpush.bf16.xpose.msra.mxu0 %v276
        %286 = vmatmul.bf16.gmra.mxu0 %v273
        %v287 = vpop.f32.mrf.mxu0
        %v288 = vadd.f32 0.0, %v287
        %v289 = vpop.f32.mrf.mxu0
        %290 = vdwg.mxu0
        %v291 = vsel %vm271, %v288, -inf
        %292 = vmax.xlane.f32.xlu0 %v291
        %v293 = vpop.xlane.xlu0 %292
        %v294 = vsub.f32 %v288, %v293
        %v295 = vmul.f32 %v294, 1.442695
        %v296 = vpow.pop %v295
        %v297 = vsel %vm271, %v296, 0.0
        %298 = vadd.xlane.f32.xlu0 %v297
        %v299 = vpop.xlane.xlu0 %298
        %v300 = vpack.c.bf16 %v296, %v296
        %301 = vrot.lane.b32.xlu0 %v267, 112
        %v302 = vpop.permute.xlu0 %301
        %v304 = vsel %vm271, %v300, 0
        %vm306 = vcmask 1043456
        %v308 = vsel %vm306, %v302, 0
        %310 = vmatpush.bf16.msra.mxu0 0
        %311 = vmatpush.bf16.msra.mxu0 0
        %312 = vmatpush.bf16.msra.mxu0 0
        %313 = vmatpush.bf16.msra.mxu0 0
        %314 = vmatpush.bf16.msra.mxu0 0
        %315 = vmatpush.bf16.msra.mxu0 0
        %316 = vmatpush.bf16.msra.mxu0 0
        %317 = vmatpush.bf16.msra.mxu0 %v308
        %318 = vmatmul.bf16.gmra.mxu0 %v304
        %v319 = vpop.f32.mrf.mxu0
        %v320 = vadd.f32 0.0, %v319
        %v321 = vpop.f32.mrf.mxu0
        %322 = vdwg.mxu0
        %v323 = vrcp.pop %v299
        %v324 = vmul.f32 %v320, %v323
        %v325 = vld [vmem:[%s209] sm:$0xff]
        %v326 = vpack.c.bf16 %v324, %v324
        %v328 = vsel %vm271, %v326, 0
        %v331 = vsel %vm306, %v234, 0
        %333 = vmatpush.bf16.msra.mxu0 0
        %334 = vmatpush.bf16.msra.mxu0 0
        %335 = vmatpush.bf16.msra.mxu0 0
        %336 = vmatpush.bf16.msra.mxu0 0
        %337 = vmatpush.bf16.msra.mxu0 0
        %338 = vmatpush.bf16.msra.mxu0 0
        %339 = vmatpush.bf16.msra.mxu0 0
        %340 = vmatpush.bf16.msra.mxu0 %v331
        %341 = vmatmul.bf16.gmra.mxu0 %v328
        %v342 = vpop.f32.mrf.mxu0
        %v343 = vadd.f32 0.0, %v342
        %v344 = vpop.f32.mrf.mxu0
        %345 = vdwg.mxu0
        %v346 = vadd.f32 %v325, %v343
        %347 = vst.msk [vmem:[%s209] sm:$0xff] %vm248, %v346
        %s348 = sand.u32 %s136, 1
        %s349 = scalar_lea.sflag [#allocation3], %s348
        %s350 = sand.u32 %s136, 1
        %s351 = smul.addr %s350, 8
        %s352 = scalar_lea.vmem [#allocation2], %s351
        // Predicated region
        $region41: #{tpu_custom_call.1} parent=35 // pred_check
          %p353 = pneg %p146
        $region42: #{tpu_custom_call.1} parent=35 // pred_check_branch
          %355 = sbr.rel (%p353) target = $region44
        $region43: #{tpu_custom_call.1} parent=35 // pred_region
          %357 = vsyncadd %s349, 0
          %s358 = sadd.s32 %s24, %s23
          %s359 = smul.addr %s358, 8
          %s360 = scalar_lea.hbm %s4, %s359
          %s362 = sshll.u32 %s352, 4
          %s363 = int_to_ptr.vmem [resolvable:$true] %s362
          %s364 = sshll.u32 %s360, 4
          %s365 = int_to_ptr.hbm [resolvable:$true] %s364
          %367 = dma.vmem_to_hbm [thread:$0]  %s363, 128, %s365, %s349
        $region44: #{tpu_custom_call.1} parent=35 // pred_fallthru
          _
      $region36: #{tpu_custom_call.1} parent=5 // pred_fallthru
        _
      %p368 = scmp.le.s32.totalorder 2, %s13
      // Predicated region
      $region45: #{tpu_custom_call.1} parent=5 // pred_check
        %p369 = pneg %p368
      $region46: #{tpu_custom_call.1} parent=5 // pred_check_branch
        %371 = sbr.rel (%p369) target = $region48
      $region47: #{tpu_custom_call.1} parent=5 // pred_region
        %s372 = ssub.s32 %s13, 2
        // Predicated region
        $region49: #{tpu_custom_call.1} parent=47 // pred_check
          %p373 = pneg %p152
        $region50: #{tpu_custom_call.1} parent=47 // pred_check_branch
          %375 = sbr.rel (%p373) target = $region52
        $region51: #{tpu_custom_call.1} parent=47 // pred_region
          %s376 = sand.u32 %s137, 1
          %s377 = scalar_lea.sflag [#allocation3], %s376
          %s378 = sand.u32 %s137, 1
          %s379 = smul.addr %s378, 8
          %s380 = scalar_lea.vmem [#allocation2], %s379
          %382 = dma.done %s377, 128
        $region52: #{tpu_custom_call.1} parent=47 // pred_fallthru
          _
      $region48: #{tpu_custom_call.1} parent=5 // pred_fallthru
        _
    $region6: #{tpu_custom_call.1} parent=1 // loop_footer
      %s17 = sadd.s32 1, %s13
    $region7: #{tpu_custom_call.1} parent=1 // loop_footer_branch
      %12 = sbr.rel target = $region3
    $region8: #{tpu_custom_call.1} parent=1 // loop_exit
      _
    %383 = vsyncpa [#allocation3], 1
    %s384 = scalar_lea.sflag [#allocation3], 1
    %385 = vsyncpa %s384, 1

</llo_original>
